<compile_context>
chip_gen: v7x
topology: tpu7x:2x2x1
jax: 0.10.0
libtpu: 0.0.40
codegen_flags: <defaults>
</compile_context>

<pallas_src>
import jax
import jax.numpy as jnp
from jax.experimental import pallas as pl
from jax.experimental.pallas import tpu as pltpu


def hidden_kernel(w_ref, b_ref, x_ref, o_ref):
    # w_ref: (N, K)  b_ref: (N, 1) f32  x_ref: (K, TM)  o_ref: (N, TM) f32
    acc = jnp.dot(w_ref[...], x_ref[...], preferred_element_type=jnp.float32)
    acc = acc + b_ref[...]                       # (N, 1) broadcasts over lanes
    o_ref[...] = jnp.maximum(acc, 0.0).astype(o_ref.dtype)   # ReLU


_TM_CAP = 512            # 512-1024 lanes hits ~85%+ of HBM roofline (measured);
                         # the smaller cap also yields >=2 parallel grid steps
                         # sooner, so v7x's 2 TensorCores both get work.
_VMEM_BUDGET = 24 << 20  # conservative vs v7x's 32 MiB scoped VMEM default


def _pick_tm(M, K, N, op_bytes):
    """Largest lane tile (multiple of 128, <= cap) that fits the VMEM budget."""
    if M <= _TM_CAP:
        return M                                    # full-extent block: always legal
    resident = K * N * op_bytes + N * 4             # W^T (single-buffered) + bias
    per_col = 2 * K * op_bytes + 2 * N * 4          # dbl-buffered X^T col + f32 out col
    tm = (_VMEM_BUDGET - resident) // per_col
    tm = min(tm, _TM_CAP, M)
    return max(128, (tm // 128) * 128)


def _build_call(M, K, N, tm, single_buffer_resident):
    resident_kw = (
        dict(pipeline_mode=pl.Buffered(1)) if single_buffer_resident else {}
    )
    grid = (pl.cdiv(M, tm),)
    return pl.pallas_call(
        hidden_kernel,
        out_shape=jax.ShapeDtypeStruct((N, M), jnp.float32),
        grid_spec=pltpu.PrefetchScalarGridSpec(
            num_scalar_prefetch=0,
            grid=grid,
            in_specs=[
                pl.BlockSpec((N, K), lambda i: (0, 0), **resident_kw),   # W^T (resident)
                pl.BlockSpec((N, 1), lambda i: (0, 0), **resident_kw),   # bias (resident)
                pl.BlockSpec((K, tm), lambda i: (0, i)),                 # X^T tile
            ],
            out_specs=pl.BlockSpec((N, tm), lambda i: (0, i)),           # out^T tile
        ),
        compiler_params=pltpu.CompilerParams(
            dimension_semantics=("parallel",),
        ),
    )


def hidden_forward(x, w, b, *, tm=None, use_bf16=True):
    """ReLU(x @ w + b) via a fused, lane-dense Pallas TPU kernel.

    x: (M, K), w: (K, N), b: (N,)  ->  (M, N) float32
    """
    M, K = x.shape
    K2, N = w.shape
    assert K == K2 and b.shape == (N,)

    op_dtype = jnp.bfloat16 if use_bf16 else jnp.float32
    op_bytes = jnp.dtype(op_dtype).itemsize

    # Wrapper-side layout plumbing: batch dim onto lanes, bf16 matmul operands.
    x_t = x.T.astype(op_dtype)                  # (K, M)
    w_t = w.T.astype(op_dtype)                  # (N, K)
    b2d = b.astype(jnp.float32).reshape(N, 1)   # (N, 1), stays f32

    if tm is None:
        tm = _pick_tm(M, K, N, op_bytes)
    assert tm == M or tm % 128 == 0, "lane tile must be full-extent or 128-aligned"

    # TODO(synk): if K ever grows to thousands, add a K grid axis ("arbitrary",
    # last) with a (N, tm) f32 accumulator and pl.when init/finalize instead of
    # keeping the full (N, K) W resident in VMEM.

    try:
        out_t = _build_call(M, K, N, tm, True)(w_t, b2d, x_t)
    except Exception:
        # Some jax versions reject pipeline_mode=pl.Buffered(1); fall back to
        # default double-buffering of the (tiny) resident W / bias.
        out_t = _build_call(M, K, N, tm, False)(w_t, b2d, x_t)

    return out_t.T                               # back to (M, N)


if __name__ == "__main__":
    # Module config: Hidden(no_in=32, no_out=16, bias=True, activation=nn.ReLU())
    no_in, no_out = 32, 16
    batch = 8

    key = jax.random.PRNGKey(0)
    kx, kw, kb = jax.random.split(key, 3)

    # Deterministic "reset_parameters": W ~ Normal(0, tau_w=1), b ~ Normal(0, 1)
    W = jax.random.normal(kw, (no_in, no_out), dtype=jnp.float32)
    b = jax.random.normal(kb, (no_out,), dtype=jnp.float32)
    X = jax.random.normal(kx, (batch, no_in), dtype=jnp.float32)

    ref_f32 = jnp.maximum(X @ W + b, 0.0)

    # f32-operand path: near-exact check against the PyTorch forward semantics.
    out_f32 = jax.block_until_ready(hidden_forward(X, W, b, use_bf16=False))
    assert out_f32.shape == (batch, no_out)
    assert jnp.allclose(out_f32, ref_f32, atol=1e-5, rtol=1e-5)

    # Default bf16-operand path (f32 accumulation): check against bf16 reference
    # and loosely against the f32 reference.
    out_bf16 = jax.block_until_ready(hidden_forward(X, W, b))
    ref_bf16 = jnp.maximum(
        jnp.dot(X.astype(jnp.bfloat16), W.astype(jnp.bfloat16),
                preferred_element_type=jnp.float32) + b, 0.0)
    assert out_bf16.shape == (batch, no_out)
    assert jnp.allclose(out_bf16, ref_bf16, atol=1e-3, rtol=1e-3)
    assert jnp.allclose(out_bf16, ref_f32, atol=2e-1, rtol=5e-2)

    print("KERNEL_OK")
</pallas_src>

<mosaic_0001>
module attributes {stable_mosaic.version = 11 : i64} {
  func.func @hidden_kernel(%arg0: i32, %arg1: memref<16x32xf32, #tpu.memory_space<vmem>>, %arg2: memref<16x1xf32, #tpu.memory_space<vmem>>, %arg3: memref<32x8xf32, #tpu.memory_space<vmem>>, %arg4: memref<16x8xf32, #tpu.memory_space<vmem>>) attributes {dimension_semantics = [#tpu.dimension_semantics<parallel>], iteration_bounds = array<i64: 1>, scalar_prefetch = 0 : i64, scratch_operands = 0 : i64, tpu.core_type = #tpu.core_type<tc>, window_params = [{pipeline_mode = #tpu.pipeline_mode<synchronous>, transform_indices = @transform_0, window_bounds = array<i64: 16, 32>}, {pipeline_mode = #tpu.pipeline_mode<synchronous>, transform_indices = @transform_1, window_bounds = array<i64: 16, 1>}, {transform_indices = @transform_2, window_bounds = array<i64: 32, 8>}, {transform_indices = @transform_3, window_bounds = array<i64: 16, 8>}]} {
    %c0 = arith.constant 0 : index
    %c0_0 = arith.constant 0 : index
    %0 = vector.load %arg1[%c0, %c0_0] : memref<16x32xf32, #tpu.memory_space<vmem>>, vector<16x32xf32>
    %c0_1 = arith.constant 0 : index
    %c0_2 = arith.constant 0 : index
    %1 = vector.load %arg3[%c0_1, %c0_2] : memref<32x8xf32, #tpu.memory_space<vmem>>, vector<32x8xf32>
    %cst = arith.constant dense<0.000000e+00> : vector<16x8xf32>
    %2 = tpu.matmul %0, %1, %cst {dimension_numbers = #tpu.dot_dimension_numbers<[1], [0], [0], [1], [0, 0, 1, 1], [], []>} : vector<16x32xf32>, vector<32x8xf32>, vector<16x8xf32> -> vector<16x8xf32>
    %c0_3 = arith.constant 0 : index
    %c0_4 = arith.constant 0 : index
    %3 = vector.load %arg2[%c0_3, %c0_4] : memref<16x1xf32, #tpu.memory_space<vmem>>, vector<16x1xf32>
    %4 = vector.broadcast %3 : vector<16x1xf32> to vector<16x8xf32>
    %5 = arith.addf %2, %4 : vector<16x8xf32>
    %cst_5 = arith.constant 0.000000e+00 : f32
    %6 = vector.broadcast %cst_5 : f32 to vector<16x8xf32>
    %7 = arith.maximumf %5, %6 : vector<16x8xf32>
    %c0_6 = arith.constant 0 : index
    %c0_7 = arith.constant 0 : index
    %8 = vector.load %arg4[%c0_6, %c0_7] : memref<16x8xf32, #tpu.memory_space<vmem>>, vector<16x8xf32>
    tpu.vector_store %arg4[%c0_6, %c0_7], %7 {strides = array<i32>} : memref<16x8xf32, #tpu.memory_space<vmem>>, vector<16x8xf32>,
    return
  }
  func.func @transform_0(%arg0: i32) -> (i32, i32) {
    %c0_i32 = arith.constant 0 : i32
    %c0_i32_0 = arith.constant 0 : i32
    %c0_i32_1 = arith.constant 0 : i32
    return %c0_i32, %c0_i32_0 : i32, i32
  }
  func.func @transform_1(%arg0: i32) -> (i32, i32) {
    %c0_i32 = arith.constant 0 : i32
    %c0_i32_0 = arith.constant 0 : i32
    %c0_i32_1 = arith.constant 0 : i32
    return %c0_i32, %c0_i32_0 : i32, i32
  }
  func.func @transform_2(%arg0: i32) -> (i32, i32) {
    %c0_i32 = arith.constant 0 : i32
    %c0_i32_0 = arith.constant 0 : i32
    return %c0_i32, %arg0 : i32, i32
  }
  func.func @transform_3(%arg0: i32) -> (i32, i32) {
    %c0_i32 = arith.constant 0 : i32
    %c0_i32_0 = arith.constant 0 : i32
    return %c0_i32, %arg0 : i32, i32
  }
}

module attributes {stable_mosaic.version = 11 : i64} {
  func.func @hidden_kernel(%arg0: i32, %arg1: memref<16x32xf32, #tpu.memory_space<vmem>>, %arg2: memref<16x1xf32, #tpu.memory_space<vmem>>, %arg3: memref<32x8xf32, #tpu.memory_space<vmem>>, %arg4: memref<16x8xf32, #tpu.memory_space<vmem>>) attributes {dimension_semantics = [#tpu.dimension_semantics<parallel>], iteration_bounds = array<i64: 1>, scalar_prefetch = 0 : i64, scratch_operands = 0 : i64, tpu.core_type = #tpu.core_type<tc>, window_params = [{pipeline_mode = #tpu.pipeline_mode<synchronous>, transform_indices = @transform_0, window_bounds = array<i64: 16, 32>}, {pipeline_mode = #tpu.pipeline_mode<synchronous>, transform_indices = @transform_1, window_bounds = array<i64: 16, 1>}, {transform_indices = @transform_2, window_bounds = array<i64: 32, 8>}, {transform_indices = @transform_3, window_bounds = array<i64: 16, 8>}]} {
    %c0 = arith.constant 0 : index
    %c0_0 = arith.constant 0 : index
    %0 = vector.load %arg1[%c0, %c0_0] : memref<16x32xf32, #tpu.memory_space<vmem>>, vector<16x32xf32>
    %c0_1 = arith.constant 0 : index
    %c0_2 = arith.constant 0 : index
    %1 = vector.load %arg3[%c0_1, %c0_2] : memref<32x8xf32, #tpu.memory_space<vmem>>, vector<32x8xf32>
    %cst = arith.constant dense<0.000000e+00> : vector<16x8xf32>
    %2 = tpu.matmul %0, %1, %cst {dimension_numbers = #tpu.dot_dimension_numbers<[1], [0], [0], [1], [0, 0, 1, 1], [], []>} : vector<16x32xf32>, vector<32x8xf32>, vector<16x8xf32> -> vector<16x8xf32>
    %c0_3 = arith.constant 0 : index
    %c0_4 = arith.constant 0 : index
    %3 = vector.load %arg2[%c0_3, %c0_4] : memref<16x1xf32, #tpu.memory_space<vmem>>, vector<16x1xf32>
    %4 = vector.broadcast %3 : vector<16x1xf32> to vector<16x8xf32>
    %5 = arith.addf %2, %4 : vector<16x8xf32>
    %cst_5 = arith.constant 0.000000e+00 : f32
    %6 = vector.broadcast %cst_5 : f32 to vector<16x8xf32>
    %7 = arith.maximumf %5, %6 : vector<16x8xf32>
    %c0_6 = arith.constant 0 : index
    %c0_7 = arith.constant 0 : index
    %8 = vector.load %arg4[%c0_6, %c0_7] : memref<16x8xf32, #tpu.memory_space<vmem>>, vector<16x8xf32>
    tpu.vector_store %arg4[%c0_6, %c0_7], %7 {strides = array<i32>} : memref<16x8xf32, #tpu.memory_space<vmem>>, vector<16x8xf32>,
    return
  }
  func.func @transform_0(%arg0: i32) -> (i32, i32) {
    %c0_i32 = arith.constant 0 : i32
    %c0_i32_0 = arith.constant 0 : i32
    %c0_i32_1 = arith.constant 0 : i32
    return %c0_i32, %c0_i32_0 : i32, i32
  }
  func.func @transform_1(%arg0: i32) -> (i32, i32) {
    %c0_i32 = arith.constant 0 : i32
    %c0_i32_0 = arith.constant 0 : i32
    %c0_i32_1 = arith.constant 0 : i32
    return %c0_i32, %c0_i32_0 : i32, i32
  }
  func.func @transform_2(%arg0: i32) -> (i32, i32) {
    %c0_i32 = arith.constant 0 : i32
    %c0_i32_0 = arith.constant 0 : i32
    return %c0_i32, %arg0 : i32, i32
  }
  func.func @transform_3(%arg0: i32) -> (i32, i32) {
    %c0_i32 = arith.constant 0 : i32
    %c0_i32_0 = arith.constant 0 : i32
    return %c0_i32, %arg0 : i32, i32
  }
}

</mosaic_0001>

<llo_original>
// kernel: tpu_custom_call.1
$region0: #{tpu_custom_call.1}
  #allocation0 [shape = 'u32[]', space=smem, size = 0x4, offset = 0x4, fixed_abs, tag = 'smem constant byte address 0x4 - core index']
  #allocation1 [shape = 'u32[144,128]{1,0:T(1,128)}', space=vmem, size = 0x12000, scoped, tag = 'internal scratch']
  %s0 = inlined_call_operand.vmem [shape: f32[16,32], index: 0, kind: input, shape index: {}]
  %s1 = inlined_call_operand.vmem [shape: f32[16,1], index: 1, kind: input, shape index: {}]
  %s2 = inlined_call_operand.vmem [shape: f32[32,8], index: 2, kind: input, shape index: {}]
  %s3 = inlined_call_operand.vmem [shape: f32[16,8], index: 3, kind: output, shape index: {}]
  %s4 = sld [smem:[#allocation0]]
  $region22: #{tpu_custom_call.1} parent=0
    _
  %s6 = ssub.s32 1, %s4
  %s7 = scalar_select 0, %s6, %s4
  // Predicated region
  $region2: #{tpu_custom_call.1} parent=0 // pred_check
    _
  $region3: #{tpu_custom_call.1} parent=0 // pred_check_branch
    %9 = sbr.rel (0) target = $region5
  $region4: #{tpu_custom_call.1} parent=0 // pred_region
    _
  $region5: #{tpu_custom_call.1} parent=0 // pred_fallthru
    _
  // Predicated region
  $region6: #{tpu_custom_call.1} parent=0 // pred_check
    _
  $region7: #{tpu_custom_call.1} parent=0 // pred_check_branch
    %11 = sbr.rel (0) target = $region9
  $region8: #{tpu_custom_call.1} parent=0 // pred_region
    _
  $region9: #{tpu_custom_call.1} parent=0 // pred_fallthru
    _
  // Predicated region
  $region10: #{tpu_custom_call.1} parent=0 // pred_check
    _
  $region11: #{tpu_custom_call.1} parent=0 // pred_check_branch
    %13 = sbr.rel (0) target = $region13
  $region12: #{tpu_custom_call.1} parent=0 // pred_region
    _
  $region13: #{tpu_custom_call.1} parent=0 // pred_fallthru
    _
  %v14 = vld [vmem:[%s0] sm:$0xff]
  %v15 = vld [vmem:[%s0 + $0x8] sm:$0xff]
  %v16 = vld [vmem:[%s2] sm:$0xff]
  %v17 = vld [vmem:[%s2 + $0x8] sm:$0xff]
  %v18 = vld [vmem:[%s2 + $0x10] sm:$0xff]
  %v19 = vld [vmem:[%s2 + $0x18] sm:$0xff]
  %v20 = vld [vmem:[%s1] sm:$0xff]
  %v21 = vld [vmem:[%s1 + $0x8] sm:$0xff]
  %23 = vset.pattern.permute.xlu0 0
  %24 = vperm.xlu0 %23, %v20
  %v25 = vpop.permute.xlu0 %24
  %28 = vset.pattern.permute.xlu0 0
  %29 = vperm.xlu0 %28, %v21
  %v30 = vpop.permute.xlu0 %29
  %vm32 = vcmask 261120
  %v34 = vsel %vm32, %v14, 0
  %v37 = vsel %vm32, %v15, 0
  %39 = vmatprep.subr.mxu0 0.0
  %40 = vmatpush1.msra.mxu0 %v16
  %41 = vmatprep.subr.mxu0 0.0
  %42 = vmatpush1.msra.mxu0 %v17
  %43 = vmatprep.subr.mxu0 0.0
  %44 = vmatpush1.msra.mxu0 %v18
  %45 = vmatprep.subr.mxu0 0.0
  %46 = vmatpush1.msra.mxu0 %v19
  %47 = vmatprep.subr.mxu0 0.0
  %48 = vmatpush1.msra.mxu0 0.0
  %49 = vmatprep.subr.mxu0 0.0
  %50 = vmatpush1.msra.mxu0 0.0
  %51 = vmatprep.subr.mxu0 0.0
  %52 = vmatpush1.msra.mxu0 0.0
  %53 = vmatprep.subr.mxu0 0.0
  %54 = vmatpush1.msra.mxu0 0.0
  %55 = vmatprep.subr.mxu0 0.0
  %56 = vmatpush1.msra.mxu0 0.0
  %57 = vmatprep.subr.mxu0 0.0
  %58 = vmatpush1.msra.mxu0 0.0
  %59 = vmatprep.subr.mxu0 0.0
  %60 = vmatpush1.msra.mxu0 0.0
  %61 = vmatprep.subr.mxu0 0.0
  %62 = vmatpush1.msra.mxu0 0.0
  %63 = vmatprep.subr.mxu0 0.0
  %64 = vmatpush1.msra.mxu0 0.0
  %65 = vmatprep.subr.mxu0 0.0
  %66 = vmatpush1.msra.mxu0 0.0
  %67 = vmatprep.subr.mxu0 0.0
  %68 = vmatpush1.msra.mxu0 0.0
  %69 = vmatprep.subr.mxu0 0.0
  %70 = vmatpush1.msra.mxu0 0.0
  %71 = vmatprep.subr.mxu0 0.0
  %72 = vmatpush1.msra.mxu0 0.0
  %73 = vmatprep.subr.mxu0 0.0
  %74 = vmatpush1.msra.mxu0 0.0
  %75 = vmatprep.subr.mxu0 0.0
  %76 = vmatpush1.msra.mxu0 0.0
  %77 = vmatprep.subr.mxu0 0.0
  %78 = vmatpush1.msra.mxu0 0.0
  %79 = vmatprep.subr.mxu0 0.0
  %80 = vmatpush1.msra.mxu0 0.0
  %81 = vmatprep.subr.mxu0 0.0
  %82 = vmatpush1.msra.mxu0 0.0
  %83 = vmatprep.subr.mxu0 0.0
  %84 = vmatpush1.msra.mxu0 0.0
  %85 = vmatprep.subr.mxu0 0.0
  %86 = vmatpush1.msra.mxu0 0.0
  %87 = vmatprep.subr.mxu0 0.0
  %88 = vmatpush1.msra.mxu0 0.0
  %89 = vmatprep.subr.mxu0 0.0
  %90 = vmatpush1.msra.mxu0 0.0
  %91 = vmatprep.subr.mxu0 0.0
  %92 = vmatpush1.msra.mxu0 0.0
  %93 = vmatprep.subr.mxu0 0.0
  %94 = vmatpush1.msra.mxu0 0.0
  %95 = vmatprep.subr.mxu0 0.0
  %96 = vmatpush1.msra.mxu0 0.0
  %97 = vmatprep.subr.mxu0 0.0
  %98 = vmatpush1.msra.mxu0 0.0
  %99 = vmatprep.subr.mxu0 0.0
  %100 = vmatpush1.msra.mxu0 0.0
  %101 = vmatprep.subr.mxu0 0.0
  %102 = vmatpush1.msra.mxu0 0.0
  %103 = vmatprep.mubr.f32.mxu0 0.0
  %104 = vmatmul.mubr.f32.gmra.mrb[0].mxu0 %v34
  %v105 = vpop.f32.mrb[0].mxu0
  %v106 = vadd.f32 %v25, %v105
  %v107 = vpop.f32.mrb[0].mxu0
  %108 = vmatprep.mubr.f32.mxu0 0.0
  %109 = vmatmul.mubr.f32.gmra.mrb[0].mxu0 %v37
  %v110 = vpop.f32.mrb[0].mxu0
  %v111 = vadd.f32 %v30, %v110
  %v112 = vpop.f32.mrb[0].mxu0
  %113 = vdwg.mxu0
  %v114 = vmax.f32 %v106, 0.0
  %v115 = vmax.f32 %v111, 0.0
  %vm116 = vcmask 64512
  %117 = vst.msk [vmem:[%s3] sm:$0xff] %vm116, %v114
  %118 = vst.msk [vmem:[%s3 + $0x8] sm:$0xff] %vm116, %v115
  // Predicated region
  $region14: #{tpu_custom_call.1} parent=0 // pred_check
    _
  $region15: #{tpu_custom_call.1} parent=0 // pred_check_branch
    %120 = sbr.rel (0) target = $region17
  $region16: #{tpu_custom_call.1} parent=0 // pred_region
    _
  $region17: #{tpu_custom_call.1} parent=0 // pred_fallthru
    _
  // Predicated region
  $region18: #{tpu_custom_call.1} parent=0 // pred_check
    _
  $region19: #{tpu_custom_call.1} parent=0 // pred_check_branch
    %122 = sbr.rel (0) target = $region21
  $region20: #{tpu_custom_call.1} parent=0 // pred_region
    _
  $region21: #{tpu_custom_call.1} parent=0 // pred_fallthru
    _

// kernel: tpu_custom_call.1
$region0: #{tpu_custom_call.1}
  #allocation0 [shape = 'u32[]', space=smem, size = 0x4, offset = 0x4, fixed_abs, tag = 'smem constant byte address 0x4 - core index']
  #allocation1 [shape = 'u32[144,128]{1,0:T(1,128)}', space=vmem, size = 0x12000, scoped, tag = 'internal scratch']
  %s0 = inlined_call_operand.vmem [shape: f32[16,32], index: 0, kind: input, shape index: {}]
  %s1 = inlined_call_operand.vmem [shape: f32[16,1], index: 1, kind: input, shape index: {}]
  %s2 = inlined_call_operand.vmem [shape: f32[32,8], index: 2, kind: input, shape index: {}]
  %s3 = inlined_call_operand.vmem [shape: f32[16,8], index: 3, kind: output, shape index: {}]
  %s4 = sld [smem:[#allocation0]]
  $region22: #{tpu_custom_call.1} parent=0
    _
  %s6 = ssub.s32 1, %s4
  %s7 = scalar_select 0, %s6, %s4
  // Predicated region
  $region2: #{tpu_custom_call.1} parent=0 // pred_check
    _
  $region3: #{tpu_custom_call.1} parent=0 // pred_check_branch
    %9 = sbr.rel (0) target = $region5
  $region4: #{tpu_custom_call.1} parent=0 // pred_region
    _
  $region5: #{tpu_custom_call.1} parent=0 // pred_fallthru
    _
  // Predicated region
  $region6: #{tpu_custom_call.1} parent=0 // pred_check
    _
  $region7: #{tpu_custom_call.1} parent=0 // pred_check_branch
    %11 = sbr.rel (0) target = $region9
  $region8: #{tpu_custom_call.1} parent=0 // pred_region
    _
  $region9: #{tpu_custom_call.1} parent=0 // pred_fallthru
    _
  // Predicated region
  $region10: #{tpu_custom_call.1} parent=0 // pred_check
    _
  $region11: #{tpu_custom_call.1} parent=0 // pred_check_branch
    %13 = sbr.rel (0) target = $region13
  $region12: #{tpu_custom_call.1} parent=0 // pred_region
    _
  $region13: #{tpu_custom_call.1} parent=0 // pred_fallthru
    _
  %v14 = vld [vmem:[%s0] sm:$0xff]
  %v15 = vld [vmem:[%s0 + $0x8] sm:$0xff]
  %v16 = vld [vmem:[%s2] sm:$0xff]
  %v17 = vld [vmem:[%s2 + $0x8] sm:$0xff]
  %v18 = vld [vmem:[%s2 + $0x10] sm:$0xff]
  %v19 = vld [vmem:[%s2 + $0x18] sm:$0xff]
  %v20 = vld [vmem:[%s1] sm:$0xff]
  %v21 = vld [vmem:[%s1 + $0x8] sm:$0xff]
  %23 = vset.pattern.permute.xlu0 0
  %24 = vperm.xlu0 %23, %v20
  %v25 = vpop.permute.xlu0 %24
  %28 = vset.pattern.permute.xlu0 0
  %29 = vperm.xlu0 %28, %v21
  %v30 = vpop.permute.xlu0 %29
  %vm32 = vcmask 261120
  %v34 = vsel %vm32, %v14, 0
  %v37 = vsel %vm32, %v15, 0
  %39 = vmatprep.subr.mxu0 0.0
  %40 = vmatpush1.msra.mxu0 %v16
  %41 = vmatprep.subr.mxu0 0.0
  %42 = vmatpush1.msra.mxu0 %v17
  %43 = vmatprep.subr.mxu0 0.0
  %44 = vmatpush1.msra.mxu0 %v18
  %45 = vmatprep.subr.mxu0 0.0
  %46 = vmatpush1.msra.mxu0 %v19
  %47 = vmatprep.subr.mxu0 0.0
  %48 = vmatpush1.msra.mxu0 0.0
  %49 = vmatprep.subr.mxu0 0.0
  %50 = vmatpush1.msra.mxu0 0.0
  %51 = vmatprep.subr.mxu0 0.0
  %52 = vmatpush1.msra.mxu0 0.0
  %53 = vmatprep.subr.mxu0 0.0
  %54 = vmatpush1.msra.mxu0 0.0
  %55 = vmatprep.subr.mxu0 0.0
  %56 = vmatpush1.msra.mxu0 0.0
  %57 = vmatprep.subr.mxu0 0.0
  %58 = vmatpush1.msra.mxu0 0.0
  %59 = vmatprep.subr.mxu0 0.0
  %60 = vmatpush1.msra.mxu0 0.0
  %61 = vmatprep.subr.mxu0 0.0
  %62 = vmatpush1.msra.mxu0 0.0
  %63 = vmatprep.subr.mxu0 0.0
  %64 = vmatpush1.msra.mxu0 0.0
  %65 = vmatprep.subr.mxu0 0.0
  %66 = vmatpush1.msra.mxu0 0.0
  %67 = vmatprep.subr.mxu0 0.0
  %68 = vmatpush1.msra.mxu0 0.0
  %69 = vmatprep.subr.mxu0 0.0
  %70 = vmatpush1.msra.mxu0 0.0
  %71 = vmatprep.subr.mxu0 0.0
  %72 = vmatpush1.msra.mxu0 0.0
  %73 = vmatprep.subr.mxu0 0.0
  %74 = vmatpush1.msra.mxu0 0.0
  %75 = vmatprep.subr.mxu0 0.0
  %76 = vmatpush1.msra.mxu0 0.0
  %77 = vmatprep.subr.mxu0 0.0
  %78 = vmatpush1.msra.mxu0 0.0
  %79 = vmatprep.subr.mxu0 0.0
  %80 = vmatpush1.msra.mxu0 0.0
  %81 = vmatprep.subr.mxu0 0.0
  %82 = vmatpush1.msra.mxu0 0.0
  %83 = vmatprep.subr.mxu0 0.0
  %84 = vmatpush1.msra.mxu0 0.0
  %85 = vmatprep.subr.mxu0 0.0
  %86 = vmatpush1.msra.mxu0 0.0
  %87 = vmatprep.subr.mxu0 0.0
  %88 = vmatpush1.msra.mxu0 0.0
  %89 = vmatprep.subr.mxu0 0.0
  %90 = vmatpush1.msra.mxu0 0.0
  %91 = vmatprep.subr.mxu0 0.0
  %92 = vmatpush1.msra.mxu0 0.0
  %93 = vmatprep.subr.mxu0 0.0
  %94 = vmatpush1.msra.mxu0 0.0
  %95 = vmatprep.subr.mxu0 0.0
  %96 = vmatpush1.msra.mxu0 0.0
  %97 = vmatprep.subr.mxu0 0.0
  %98 = vmatpush1.msra.mxu0 0.0
  %99 = vmatprep.subr.mxu0 0.0
  %100 = vmatpush1.msra.mxu0 0.0
  %101 = vmatprep.subr.mxu0 0.0
  %102 = vmatpush1.msra.mxu0 0.0
  %103 = vmatprep.mubr.f32.mxu0 0.0
  %104 = vmatmul.mubr.f32.gmra.mrb[0].mxu0 %v34
  %v105 = vpop.f32.mrb[0].mxu0
  %v106 = vadd.f32 %v25, %v105
  %v107 = vpop.f32.mrb[0].mxu0
  %108 = vmatprep.mubr.f32.mxu0 0.0
  %109 = vmatmul.mubr.f32.gmra.mrb[0].mxu0 %v37
  %v110 = vpop.f32.mrb[0].mxu0
  %v111 = vadd.f32 %v30, %v110
  %v112 = vpop.f32.mrb[0].mxu0
  %113 = vdwg.mxu0
  %v114 = vmax.f32 %v106, 0.0
  %v115 = vmax.f32 %v111, 0.0
  %vm116 = vcmask 64512
  %117 = vst.msk [vmem:[%s3] sm:$0xff] %vm116, %v114
  %118 = vst.msk [vmem:[%s3 + $0x8] sm:$0xff] %vm116, %v115
  // Predicated region
  $region14: #{tpu_custom_call.1} parent=0 // pred_check
    _
  $region15: #{tpu_custom_call.1} parent=0 // pred_check_branch
    %120 = sbr.rel (0) target = $region17
  $region16: #{tpu_custom_call.1} parent=0 // pred_region
    _
  $region17: #{tpu_custom_call.1} parent=0 // pred_fallthru
    _
  // Predicated region
  $region18: #{tpu_custom_call.1} parent=0 // pred_check
    _
  $region19: #{tpu_custom_call.1} parent=0 // pred_check_branch
    %122 = sbr.rel (0) target = $region21
  $region20: #{tpu_custom_call.1} parent=0 // pred_region
    _
  $region21: #{tpu_custom_call.1} parent=0 // pred_fallthru
    _

</llo_original>
